<compile_context>
chip_gen: v7x
topology: tpu7x:2x2x1
jax: 0.10.0
libtpu: 0.0.40
codegen_flags: <defaults>
</compile_context>

<pallas_src>
import jax
import jax.numpy as jnp
from jax.experimental import pallas as pl
from jax.experimental.pallas import tpu as pltpu


# ----------------------------------------------------------------------------
# Kernel: one (dn, F, TC) block of the lane-dense tensor per grid step.
#   out[d, a, :] = sum_b A[n0+d, a, b] * x[d, b, :] + t[n0+d, a]
# Params come from SMEM as scalars; all math is VPU scalar*vector FMA.
# ----------------------------------------------------------------------------
def _make_affine_kernel(dn: int, f: int):
    def kernel(a_smem, t_smem, x_ref, o_ref):
        n0 = pl.program_id(0) * dn                       # first neuron in block
        x = x_ref[...].astype(jnp.float32)               # (dn, f, TC)
        for d in range(dn):                              # static unroll (dn <= 8)
            base = (n0 + d) * f
            for a in range(f):                           # static unroll (f tiny)
                acc = a_smem[(base + a) * f] * x[d, 0:1, :]
                for b in range(1, f):
                    acc = acc + a_smem[(base + a) * f + b] * x[d, b:b + 1, :]
                acc = acc + t_smem[base + a]             # bias splat over lanes
                o_ref[d, a:a + 1, :] = acc.astype(o_ref.dtype)
    return kernel


# ----------------------------------------------------------------------------
# Wrapper: lane-dense transpose, SMEM params, (neuron-block, C-tile) grid.
# ----------------------------------------------------------------------------
def affine_transform_forward(x, As, translation, *,
                             max_lane_tile=512, max_neuron_block=8):
    D, C, F = x.shape
    assert As.shape == (D, F, F)
    assert translation.shape == (D, 1, F)

    # Lane-dense layout: batch on the lane axis.
    x_t = jnp.transpose(x, (0, 2, 1))                       # (D, F, C)
    a_flat = As.astype(jnp.float32).reshape(D * F * F)      # SMEM scalars
    t_flat = translation.astype(jnp.float32).reshape(D * F)

    # Neuron block size (grid axis 0) and lane tile (grid axis 1).
    dn = D if D <= max_neuron_block else max_neuron_block
    d_pad = -(-D // dn) * dn
    if C <= 2 * max_lane_tile:
        tc, c_pad = C, C                                    # whole batch per block
    else:
        tc = max_lane_tile                                  # 512-lane tiles
        c_pad = -(-C // tc) * tc

    if d_pad != D or c_pad != C:
        x_t = jnp.pad(x_t, ((0, d_pad - D), (0, 0), (0, c_pad - C)))
    if d_pad != D:
        a_flat = jnp.pad(a_flat, (0, (d_pad - D) * F * F))
        t_flat = jnp.pad(t_flat, (0, (d_pad - D) * F))

    grid = (d_pad // dn, c_pad // tc)

    cost = pl.CostEstimate(
        flops=2 * D * C * F * F,
        transcendentals=0,
        bytes_accessed=2 * x.size * x.dtype.itemsize
                       + (a_flat.size + t_flat.size) * 4,
    )

    out_t = pl.pallas_call(
        _make_affine_kernel(dn, F),
        out_shape=jax.ShapeDtypeStruct((d_pad, F, c_pad), x.dtype),
        grid=grid,
        in_specs=[
            pl.BlockSpec(memory_space=pltpu.MemorySpace.SMEM),    # As (flat)
            pl.BlockSpec(memory_space=pltpu.MemorySpace.SMEM),    # translation
            pl.BlockSpec((dn, F, tc), lambda n, c: (n, 0, c)),    # x, lane-dense
        ],
        out_specs=pl.BlockSpec((dn, F, tc), lambda n, c: (n, 0, c)),
        compiler_params=pltpu.CompilerParams(
            dimension_semantics=("parallel", "parallel")),
        cost_estimate=cost,
    )(a_flat, t_flat, x_t)

    out_t = out_t[:D, :, :C]
    return jnp.transpose(out_t, (0, 2, 1))                   # (D, C, F)


def affine_transform_apply(x, params, *, stochastic=False, key=None):
    """Mirrors AffineTransformOld.forward.  The training-time stochastic path is
    a host-side parameter perturbation; the kernel is the affine map."""
    As = params["As"]
    tr = params["translation"]
    if stochastic:
        kA, kT = jax.random.split(key)
        As = As + jax.random.normal(kA, As.shape, As.dtype) * jnp.exp(
            params["log_As_noise_scale"])
        tr = tr + jax.random.normal(kT, tr.shape, tr.dtype) * jnp.exp(
            params["log_translation_noise_scale"])
    return affine_transform_forward(x, As, tr)


# ----------------------------------------------------------------------------
# Pure-JAX reference (mirrors the PyTorch einsum) + deterministic init.
# ----------------------------------------------------------------------------
def affine_ref(x, As, translation):
    return jnp.einsum('nab,ncb->nca', As, x) + translation


def init_params(key, n_neurons, in_dim, init_noise_scale=0.1, perturb=True):
    As = jnp.stack([jnp.eye(in_dim, dtype=jnp.float32)] * n_neurons)
    translation = jnp.zeros((n_neurons, 1, in_dim), jnp.float32)
    if perturb:
        kA, kT = jax.random.split(key)
        As = As + 0.3 * jax.random.normal(kA, As.shape, jnp.float32)
        translation = translation + 0.3 * jax.random.normal(
            kT, translation.shape, jnp.float32)
    log_scale = jnp.log(jnp.float32(init_noise_scale))
    return dict(
        As=As,
        translation=translation,
        log_As_noise_scale=jnp.full((n_neurons, in_dim, in_dim), log_scale, jnp.float32),
        log_translation_noise_scale=jnp.full((n_neurons, 1, in_dim), log_scale, jnp.float32),
    )


if __name__ == "__main__":
    N_NEURONS, IN_DIM, BATCH = 4, 2, 8

    key = jax.random.PRNGKey(0)
    kx, kp, kn, kx2, kp2 = jax.random.split(key, 5)

    x = jax.random.normal(kx, (N_NEURONS, BATCH, IN_DIM), jnp.float32)
    params = init_params(kp, N_NEURONS, IN_DIM)

    # Deterministic forward (module default: eval / stochastic=False).
    out = jax.block_until_ready(affine_transform_apply(x, params))
    ref = affine_ref(x, params["As"], params["translation"])
    assert out.shape == (N_NEURONS, BATCH, IN_DIM)
    assert jnp.allclose(out, ref, atol=1e-5, rtol=1e-5), "deterministic mismatch"

    # Stochastic (training-time) path: host-side param perturbation, same kernel.
    out_s = jax.block_until_ready(
        affine_transform_apply(x, params, stochastic=True, key=kn))
    kA, kT = jax.random.split(kn)
    As_s = params["As"] + jax.random.normal(kA, params["As"].shape) * jnp.exp(
        params["log_As_noise_scale"])
    tr_s = params["translation"] + jax.random.normal(
        kT, params["translation"].shape) * jnp.exp(params["log_translation_noise_scale"])
    assert jnp.allclose(out_s, affine_ref(x, As_s, tr_s), atol=1e-5, rtol=1e-5), \
        "stochastic mismatch"

    # Exercise the gridded + padded path (multiple 512-lane C tiles, padded D/C).
    D2, C2 = 10, 1300
    x2 = jax.random.normal(kx2, (D2, C2, IN_DIM), jnp.float32)
    p2 = init_params(kp2, D2, IN_DIM)
    out2 = jax.block_until_ready(
        affine_transform_forward(x2, p2["As"], p2["translation"]))
    assert jnp.allclose(out2, affine_ref(x2, p2["As"], p2["translation"]),
                        atol=1e-4, rtol=1e-4), "gridded-path mismatch"

    print("KERNEL_OK")
</pallas_src>

<mosaic_0001>
module attributes {stable_mosaic.version = 11 : i64} {
  func.func @kernel(%arg0: i32, %arg1: i32, %arg2: memref<16xf32, #tpu.memory_space<smem>>, %arg3: memref<8xf32, #tpu.memory_space<smem>>, %arg4: memref<4x2x8xf32, #tpu.memory_space<vmem>>, %arg5: memref<4x2x8xf32, #tpu.memory_space<vmem>>) attributes {dimension_semantics = [#tpu.dimension_semantics<parallel>, #tpu.dimension_semantics<parallel>], iteration_bounds = array<i64: 1, 1>, scalar_prefetch = 0 : i64, scratch_operands = 0 : i64, tpu.core_type = #tpu.core_type<tc>, window_params = [{transform_indices = @transform_0, window_bounds = array<i64: 16>}, {transform_indices = @transform_1, window_bounds = array<i64: 8>}, {transform_indices = @transform_2, window_bounds = array<i64: 4, 2, 8>}, {transform_indices = @transform_3, window_bounds = array<i64: 4, 2, 8>}]} {
    %c4_i32 = arith.constant 4 : i32
    %0 = arith.muli %arg0, %c4_i32 : i32
    %c0 = arith.constant 0 : index
    %c0_0 = arith.constant 0 : index
    %c0_1 = arith.constant 0 : index
    %1 = vector.load %arg4[%c0, %c0_0, %c0_1] : memref<4x2x8xf32, #tpu.memory_space<vmem>>, vector<4x2x8xf32>
    %c0_i32 = arith.constant 0 : i32
    %2 = arith.addi %0, %c0_i32 : i32
    %c2_i32 = arith.constant 2 : i32
    %3 = arith.muli %2, %c2_i32 : i32
    %c0_i32_2 = arith.constant 0 : i32
    %4 = arith.addi %3, %c0_i32_2 : i32
    %c2_i32_3 = arith.constant 2 : i32
    %5 = arith.muli %4, %c2_i32_3 : i32
    %6 = arith.index_cast %5 : i32 to index
    %7 = memref.load %arg2[%6] : memref<16xf32, #tpu.memory_space<smem>>
    %8 = vector.extract_strided_slice %1 {offsets = [0, 0, 0], sizes = [1, 1, 8], strides = [1, 1, 1]} : vector<4x2x8xf32> to vector<1x1x8xf32>
    %9 = vector.shape_cast %8 : vector<1x1x8xf32> to vector<1x8xf32>
    %10 = vector.broadcast %7 : f32 to vector<1x8xf32>
    %11 = arith.mulf %10, %9 : vector<1x8xf32>
    %c0_i32_4 = arith.constant 0 : i32
    %12 = arith.addi %3, %c0_i32_4 : i32
    %c2_i32_5 = arith.constant 2 : i32
    %13 = arith.muli %12, %c2_i32_5 : i32
    %c1_i32 = arith.constant 1 : i32
    %14 = arith.addi %13, %c1_i32 : i32
    %15 = arith.index_cast %14 : i32 to index
    %16 = memref.load %arg2[%15] : memref<16xf32, #tpu.memory_space<smem>>
    %17 = vector.extract_strided_slice %1 {offsets = [0, 1, 0], sizes = [1, 1, 8], strides = [1, 1, 1]} : vector<4x2x8xf32> to vector<1x1x8xf32>
    %18 = vector.shape_cast %17 : vector<1x1x8xf32> to vector<1x8xf32>
    %19 = vector.broadcast %16 : f32 to vector<1x8xf32>
    %20 = arith.mulf %19, %18 : vector<1x8xf32>
    %21 = arith.addf %11, %20 : vector<1x8xf32>
    %c0_i32_6 = arith.constant 0 : i32
    %22 = arith.addi %3, %c0_i32_6 : i32
    %23 = arith.index_cast %22 : i32 to index
    %24 = memref.load %arg3[%23] : memref<8xf32, #tpu.memory_space<smem>>
    %25 = vector.broadcast %24 : f32 to vector<1x8xf32>
    %26 = arith.addf %21, %25 : vector<1x8xf32>
    %c0_7 = arith.constant 0 : index
    %c0_8 = arith.constant 0 : index
    %c0_9 = arith.constant 0 : index
    %27 = vector.load %arg5[%c0_7, %c0_8, %c0_9] : memref<4x2x8xf32, #tpu.memory_space<vmem>>, vector<1x1x8xf32>
    %28 = vector.shape_cast %27 : vector<1x1x8xf32> to vector<1x8xf32>
    %29 = vector.shape_cast %26 : vector<1x8xf32> to vector<1x1x8xf32>
    tpu.vector_store %arg5[%c0_7, %c0_8, %c0_9], %29 {strides = array<i32>} : memref<4x2x8xf32, #tpu.memory_space<vmem>>, vector<1x1x8xf32>,
    %c1_i32_10 = arith.constant 1 : i32
    %30 = arith.addi %3, %c1_i32_10 : i32
    %c2_i32_11 = arith.constant 2 : i32
    %31 = arith.muli %30, %c2_i32_11 : i32
    %32 = arith.index_cast %31 : i32 to index
    %33 = memref.load %arg2[%32] : memref<16xf32, #tpu.memory_space<smem>>
    %34 = vector.extract_strided_slice %1 {offsets = [0, 0, 0], sizes = [1, 1, 8], strides = [1, 1, 1]} : vector<4x2x8xf32> to vector<1x1x8xf32>
    %35 = vector.shape_cast %34 : vector<1x1x8xf32> to vector<1x8xf32>
    %36 = vector.broadcast %33 : f32 to vector<1x8xf32>
    %37 = arith.mulf %36, %35 : vector<1x8xf32>
    %c1_i32_12 = arith.constant 1 : i32
    %38 = arith.addi %3, %c1_i32_12 : i32
    %c2_i32_13 = arith.constant 2 : i32
    %39 = arith.muli %38, %c2_i32_13 : i32
    %c1_i32_14 = arith.constant 1 : i32
    %40 = arith.addi %39, %c1_i32_14 : i32
    %41 = arith.index_cast %40 : i32 to index
    %42 = memref.load %arg2[%41] : memref<16xf32, #tpu.memory_space<smem>>
    %43 = vector.extract_strided_slice %1 {offsets = [0, 1, 0], sizes = [1, 1, 8], strides = [1, 1, 1]} : vector<4x2x8xf32> to vector<1x1x8xf32>
    %44 = vector.shape_cast %43 : vector<1x1x8xf32> to vector<1x8xf32>
    %45 = vector.broadcast %42 : f32 to vector<1x8xf32>
    %46 = arith.mulf %45, %44 : vector<1x8xf32>
    %47 = arith.addf %37, %46 : vector<1x8xf32>
    %c1_i32_15 = arith.constant 1 : i32
    %48 = arith.addi %3, %c1_i32_15 : i32
    %49 = arith.index_cast %48 : i32 to index
    %50 = memref.load %arg3[%49] : memref<8xf32, #tpu.memory_space<smem>>
    %51 = vector.broadcast %50 : f32 to vector<1x8xf32>
    %52 = arith.addf %47, %51 : vector<1x8xf32>
    %c0_16 = arith.constant 0 : index
    %c1 = arith.constant 1 : index
    %c0_17 = arith.constant 0 : index
    %53 = vector.load %arg5[%c0_16, %c1, %c0_17] : memref<4x2x8xf32, #tpu.memory_space<vmem>>, vector<1x1x8xf32>
    %54 = vector.shape_cast %53 : vector<1x1x8xf32> to vector<1x8xf32>
    %55 = vector.shape_cast %52 : vector<1x8xf32> to vector<1x1x8xf32>
    tpu.vector_store %arg5[%c0_16, %c1, %c0_17], %55 {strides = array<i32>} : memref<4x2x8xf32, #tpu.memory_space<vmem>>, vector<1x1x8xf32>,
    %c1_i32_18 = arith.constant 1 : i32
    %56 = arith.addi %0, %c1_i32_18 : i32
    %c2_i32_19 = arith.constant 2 : i32
    %57 = arith.muli %56, %c2_i32_19 : i32
    %c0_i32_20 = arith.constant 0 : i32
    %58 = arith.addi %57, %c0_i32_20 : i32
    %c2_i32_21 = arith.constant 2 : i32
    %59 = arith.muli %58, %c2_i32_21 : i32
    %60 = arith.index_cast %59 : i32 to index
    %61 = memref.load %arg2[%60] : memref<16xf32, #tpu.memory_space<smem>>
    %62 = vector.extract_strided_slice %1 {offsets = [1, 0, 0], sizes = [1, 1, 8], strides = [1, 1, 1]} : vector<4x2x8xf32> to vector<1x1x8xf32>
    %63 = vector.shape_cast %62 : vector<1x1x8xf32> to vector<1x8xf32>
    %64 = vector.broadcast %61 : f32 to vector<1x8xf32>
    %65 = arith.mulf %64, %63 : vector<1x8xf32>
    %c0_i32_22 = arith.constant 0 : i32
    %66 = arith.addi %57, %c0_i32_22 : i32
    %c2_i32_23 = arith.constant 2 : i32
    %67 = arith.muli %66, %c2_i32_23 : i32
    %c1_i32_24 = arith.constant 1 : i32
    %68 = arith.addi %67, %c1_i32_24 : i32
    %69 = arith.index_cast %68 : i32 to index
    %70 = memref.load %arg2[%69] : memref<16xf32, #tpu.memory_space<smem>>
    %71 = vector.extract_strided_slice %1 {offsets = [1, 1, 0], sizes = [1, 1, 8], strides = [1, 1, 1]} : vector<4x2x8xf32> to vector<1x1x8xf32>
    %72 = vector.shape_cast %71 : vector<1x1x8xf32> to vector<1x8xf32>
    %73 = vector.broadcast %70 : f32 to vector<1x8xf32>
    %74 = arith.mulf %73, %72 : vector<1x8xf32>
    %75 = arith.addf %65, %74 : vector<1x8xf32>
    %c0_i32_25 = arith.constant 0 : i32
    %76 = arith.addi %57, %c0_i32_25 : i32
    %77 = arith.index_cast %76 : i32 to index
    %78 = memref.load %arg3[%77] : memref<8xf32, #tpu.memory_space<smem>>
    %79 = vector.broadcast %78 : f32 to vector<1x8xf32>
    %80 = arith.addf %75, %79 : vector<1x8xf32>
    %c1_26 = arith.constant 1 : index
    %c0_27 = arith.constant 0 : index
    %c0_28 = arith.constant 0 : index
    %81 = vector.load %arg5[%c1_26, %c0_27, %c0_28] : memref<4x2x8xf32, #tpu.memory_space<vmem>>, vector<1x1x8xf32>
    %82 = vector.shape_cast %81 : vector<1x1x8xf32> to vector<1x8xf32>
    %83 = vector.shape_cast %80 : vector<1x8xf32> to vector<1x1x8xf32>
    tpu.vector_store %arg5[%c1_26, %c0_27, %c0_28], %83 {strides = array<i32>} : memref<4x2x8xf32, #tpu.memory_space<vmem>>, vector<1x1x8xf32>,
    %c1_i32_29 = arith.constant 1 : i32
    %84 = arith.addi %57, %c1_i32_29 : i32
    %c2_i32_30 = arith.constant 2 : i32
    %85 = arith.muli %84, %c2_i32_30 : i32
    %86 = arith.index_cast %85 : i32 to index
    %87 = memref.load %arg2[%86] : memref<16xf32, #tpu.memory_space<smem>>
    %88 = vector.extract_strided_slice %1 {offsets = [1, 0, 0], sizes = [1, 1, 8], strides = [1, 1, 1]} : vector<4x2x8xf32> to vector<1x1x8xf32>
    %89 = vector.shape_cast %88 : vector<1x1x8xf32> to vector<1x8xf32>
    %90 = vector.broadcast %87 : f32 to vector<1x8xf32>
    %91 = arith.mulf %90, %89 : vector<1x8xf32>
    %c1_i32_31 = arith.constant 1 : i32
    %92 = arith.addi %57, %c1_i32_31 : i32
    %c2_i32_32 = arith.constant 2 : i32
    %93 = arith.muli %92, %c2_i32_32 : i32
    %c1_i32_33 = arith.constant 1 : i32
    %94 = arith.addi %93, %c1_i32_33 : i32
    %95 = arith.index_cast %94 : i32 to index
    %96 = memref.load %arg2[%95] : memref<16xf32, #tpu.memory_space<smem>>
    %97 = vector.extract_strided_slice %1 {offsets = [1, 1, 0], sizes = [1, 1, 8], strides = [1, 1, 1]} : vector<4x2x8xf32> to vector<1x1x8xf32>
    %98 = vector.shape_cast %97 : vector<1x1x8xf32> to vector<1x8xf32>
    %99 = vector.broadcast %96 : f32 to vector<1x8xf32>
    %100 = arith.mulf %99, %98 : vector<1x8xf32>
    %101 = arith.addf %91, %100 : vector<1x8xf32>
    %c1_i32_34 = arith.constant 1 : i32
    %102 = arith.addi %57, %c1_i32_34 : i32
    %103 = arith.index_cast %102 : i32 to index
    %104 = memref.load %arg3[%103] : memref<8xf32, #tpu.memory_space<smem>>
    %105 = vector.broadcast %104 : f32 to vector<1x8xf32>
    %106 = arith.addf %101, %105 : vector<1x8xf32>
    %c1_35 = arith.constant 1 : index
    %c1_36 = arith.constant 1 : index
    %c0_37 = arith.constant 0 : index
    %107 = vector.load %arg5[%c1_35, %c1_36, %c0_37] : memref<4x2x8xf32, #tpu.memory_space<vmem>>, vector<1x1x8xf32>
    %108 = vector.shape_cast %107 : vector<1x1x8xf32> to vector<1x8xf32>
    %109 = vector.shape_cast %106 : vector<1x8xf32> to vector<1x1x8xf32>
    tpu.vector_store %arg5[%c1_35, %c1_36, %c0_37], %109 {strides = array<i32>} : memref<4x2x8xf32, #tpu.memory_space<vmem>>, vector<1x1x8xf32>,
    %c2_i32_38 = arith.constant 2 : i32
    %110 = arith.addi %0, %c2_i32_38 : i32
    %c2_i32_39 = arith.constant 2 : i32
    %111 = arith.muli %110, %c2_i32_39 : i32
    %c0_i32_40 = arith.constant 0 : i32
    %112 = arith.addi %111, %c0_i32_40 : i32
    %c2_i32_41 = arith.constant 2 : i32
    %113 = arith.muli %112, %c2_i32_41 : i32
    %114 = arith.index_cast %113 : i32 to index
    %115 = memref.load %arg2[%114] : memref<16xf32, #tpu.memory_space<smem>>
    %116 = vector.extract_strided_slice %1 {offsets = [2, 0, 0], sizes = [1, 1, 8], strides = [1, 1, 1]} : vector<4x2x8xf32> to vector<1x1x8xf32>
    %117 = vector.shape_cast %116 : vector<1x1x8xf32> to vector<1x8xf32>
    %118 = vector.broadcast %115 : f32 to vector<1x8xf32>
    %119 = arith.mulf %118, %117 : vector<1x8xf32>
    %c0_i32_42 = arith.constant 0 : i32
    %120 = arith.addi %111, %c0_i32_42 : i32
    %c2_i32_43 = arith.constant 2 : i32
    %121 = arith.muli %120, %c2_i32_43 : i32
    %c1_i32_44 = arith.constant 1 : i32
    %122 = arith.addi %121, %c1_i32_44 : i32
    %123 = arith.index_cast %122 : i32 to index
    %124 = memref.load %arg2[%123] : memref<16xf32, #tpu.memory_space<smem>>
    %125 = vector.extract_strided_slice %1 {offsets = [2, 1, 0], sizes = [1, 1, 8], strides = [1, 1, 1]} : vector<4x2x8xf32> to vector<1x1x8xf32>
    %126 = vector.shape_cast %125 : vector<1x1x8xf32> to vector<1x8xf32>
    %127 = vector.broadcast %124 : f32 to vector<1x8xf32>
    %128 = arith.mulf %127, %126 : vector<1x8xf32>
    %129 = arith.addf %119, %128 : vector<1x8xf32>
    %c0_i32_45 = arith.constant 0 : i32
    %130 = arith.addi %111, %c0_i32_45 : i32
    %131 = arith.index_cast %130 : i32 to index
    %132 = memref.load %arg3[%131] : memref<8xf32, #tpu.memory_space<smem>>
    %133 = vector.broadcast %132 : f32 to vector<1x8xf32>
    %134 = arith.addf %129, %133 : vector<1x8xf32>
    %c2 = arith.constant 2 : index
    %c0_46 = arith.constant 0 : index
    %c0_47 = arith.constant 0 : index
    %135 = vector.load %arg5[%c2, %c0_46, %c0_47] : memref<4x2x8xf32, #tpu.memory_space<vmem>>, vector<1x1x8xf32>
    %136 = vector.shape_cast %135 : vector<1x1x8xf32> to vector<1x8xf32>
    %137 = vector.shape_cast %134 : vector<1x8xf32> to vector<1x1x8xf32>
    tpu.vector_store %arg5[%c2, %c0_46, %c0_47], %137 {strides = array<i32>} : memref<4x2x8xf32, #tpu.memory_space<vmem>>, vector<1x1x8xf32>,
    %c1_i32_48 = arith.constant 1 : i32
    %138 = arith.addi %111, %c1_i32_48 : i32
    %c2_i32_49 = arith.constant 2 : i32
    %139 = arith.muli %138, %c2_i32_49 : i32
    %140 = arith.index_cast %139 : i32 to index
    %141 = memref.load %arg2[%140] : memref<16xf32, #tpu.memory_space<smem>>
    %142 = vector.extract_strided_slice %1 {offsets = [2, 0, 0], sizes = [1, 1, 8], strides = [1, 1, 1]} : vector<4x2x8xf32> to vector<1x1x8xf32>
    %143 = vector.shape_cast %142 : vector<1x1x8xf32> to vector<1x8xf32>
    %144 = vector.broadcast %141 : f32 to vector<1x8xf32>
    %145 = arith.mulf %144, %143 : vector<1x8xf32>
    %c1_i32_50 = arith.constant 1 : i32
    %146 = arith.addi %111, %c1_i32_50 : i32
    %c2_i32_51 = arith.constant 2 : i32
    %147 = arith.muli %146, %c2_i32_51 : i32
    %c1_i32_52 = arith.constant 1 : i32
    %148 = arith.addi %147, %c1_i32_52 : i32
    %149 = arith.index_cast %148 : i32 to index
    %150 = memref.load %arg2[%149] : memref<16xf32, #tpu.memory_space<smem>>
    %151 = vector.extract_strided_slice %1 {offsets = [2, 1, 0], sizes = [1, 1, 8], strides = [1, 1, 1]} : vector<4x2x8xf32> to vector<1x1x8xf32>
    %152 = vector.shape_cast %151 : vector<1x1x8xf32> to vector<1x8xf32>
    %153 = vector.broadcast %150 : f32 to vector<1x8xf32>
    %154 = arith.mulf %153, %152 : vector<1x8xf32>
    %155 = arith.addf %145, %154 : vector<1x8xf32>
    %c1_i32_53 = arith.constant 1 : i32
    %156 = arith.addi %111, %c1_i32_53 : i32
    %157 = arith.index_cast %156 : i32 to index
    %158 = memref.load %arg3[%157] : memref<8xf32, #tpu.memory_space<smem>>
    %159 = vector.broadcast %158 : f32 to vector<1x8xf32>
    %160 = arith.addf %155, %159 : vector<1x8xf32>
    %c2_54 = arith.constant 2 : index
    %c1_55 = arith.constant 1 : index
    %c0_56 = arith.constant 0 : index
    %161 = vector.load %arg5[%c2_54, %c1_55, %c0_56] : memref<4x2x8xf32, #tpu.memory_space<vmem>>, vector<1x1x8xf32>
    %162 = vector.shape_cast %161 : vector<1x1x8xf32> to vector<1x8xf32>
    %163 = vector.shape_cast %160 : vector<1x8xf32> to vector<1x1x8xf32>
    tpu.vector_store %arg5[%c2_54, %c1_55, %c0_56], %163 {strides = array<i32>} : memref<4x2x8xf32, #tpu.memory_space<vmem>>, vector<1x1x8xf32>,
    %c3_i32 = arith.constant 3 : i32
    %164 = arith.addi %0, %c3_i32 : i32
    %c2_i32_57 = arith.constant 2 : i32
    %165 = arith.muli %164, %c2_i32_57 : i32
    %c0_i32_58 = arith.constant 0 : i32
    %166 = arith.addi %165, %c0_i32_58 : i32
    %c2_i32_59 = arith.constant 2 : i32
    %167 = arith.muli %166, %c2_i32_59 : i32
    %168 = arith.index_cast %167 : i32 to index
    %169 = memref.load %arg2[%168] : memref<16xf32, #tpu.memory_space<smem>>
    %170 = vector.extract_strided_slice %1 {offsets = [3, 0, 0], sizes = [1, 1, 8], strides = [1, 1, 1]} : vector<4x2x8xf32> to vector<1x1x8xf32>
    %171 = vector.shape_cast %170 : vector<1x1x8xf32> to vector<1x8xf32>
    %172 = vector.broadcast %169 : f32 to vector<1x8xf32>
    %173 = arith.mulf %172, %171 : vector<1x8xf32>
    %c0_i32_60 = arith.constant 0 : i32
    %174 = arith.addi %165, %c0_i32_60 : i32
    %c2_i32_61 = arith.constant 2 : i32
    %175 = arith.muli %174, %c2_i32_61 : i32
    %c1_i32_62 = arith.constant 1 : i32
    %176 = arith.addi %175, %c1_i32_62 : i32
    %177 = arith.index_cast %176 : i32 to index
    %178 = memref.load %arg2[%177] : memref<16xf32, #tpu.memory_space<smem>>
    %179 = vector.extract_strided_slice %1 {offsets = [3, 1, 0], sizes = [1, 1, 8], strides = [1, 1, 1]} : vector<4x2x8xf32> to vector<1x1x8xf32>
    %180 = vector.shape_cast %179 : vector<1x1x8xf32> to vector<1x8xf32>
    %181 = vector.broadcast %178 : f32 to vector<1x8xf32>
    %182 = arith.mulf %181, %180 : vector<1x8xf32>
    %183 = arith.addf %173, %182 : vector<1x8xf32>
    %c0_i32_63 = arith.constant 0 : i32
    %184 = arith.addi %165, %c0_i32_63 : i32
    %185 = arith.index_cast %184 : i32 to index
    %186 = memref.load %arg3[%185] : memref<8xf32, #tpu.memory_space<smem>>
    %187 = vector.broadcast %186 : f32 to vector<1x8xf32>
    %188 = arith.addf %183, %187 : vector<1x8xf32>
    %c3 = arith.constant 3 : index
    %c0_64 = arith.constant 0 : index
    %c0_65 = arith.constant 0 : index
    %189 = vector.load %arg5[%c3, %c0_64, %c0_65] : memref<4x2x8xf32, #tpu.memory_space<vmem>>, vector<1x1x8xf32>
    %190 = vector.shape_cast %189 : vector<1x1x8xf32> to vector<1x8xf32>
    %191 = vector.shape_cast %188 : vector<1x8xf32> to vector<1x1x8xf32>
    tpu.vector_store %arg5[%c3, %c0_64, %c0_65], %191 {strides = array<i32>} : memref<4x2x8xf32, #tpu.memory_space<vmem>>, vector<1x1x8xf32>,
    %c1_i32_66 = arith.constant 1 : i32
    %192 = arith.addi %165, %c1_i32_66 : i32
    %c2_i32_67 = arith.constant 2 : i32
    %193 = arith.muli %192, %c2_i32_67 : i32
    %194 = arith.index_cast %193 : i32 to index
    %195 = memref.load %arg2[%194] : memref<16xf32, #tpu.memory_space<smem>>
    %196 = vector.extract_strided_slice %1 {offsets = [3, 0, 0], sizes = [1, 1, 8], strides = [1, 1, 1]} : vector<4x2x8xf32> to vector<1x1x8xf32>
    %197 = vector.shape_cast %196 : vector<1x1x8xf32> to vector<1x8xf32>
    %198 = vector.broadcast %195 : f32 to vector<1x8xf32>
    %199 = arith.mulf %198, %197 : vector<1x8xf32>
    %c1_i32_68 = arith.constant 1 : i32
    %200 = arith.addi %165, %c1_i32_68 : i32
    %c2_i32_69 = arith.constant 2 : i32
    %201 = arith.muli %200, %c2_i32_69 : i32
    %c1_i32_70 = arith.constant 1 : i32
    %202 = arith.addi %201, %c1_i32_70 : i32
    %203 = arith.index_cast %202 : i32 to index
    %204 = memref.load %arg2[%203] : memref<16xf32, #tpu.memory_space<smem>>
    %205 = vector.extract_strided_slice %1 {offsets = [3, 1, 0], sizes = [1, 1, 8], strides = [1, 1, 1]} : vector<4x2x8xf32> to vector<1x1x8xf32>
    %206 = vector.shape_cast %205 : vector<1x1x8xf32> to vector<1x8xf32>
    %207 = vector.broadcast %204 : f32 to vector<1x8xf32>
    %208 = arith.mulf %207, %206 : vector<1x8xf32>
    %209 = arith.addf %199, %208 : vector<1x8xf32>
    %c1_i32_71 = arith.constant 1 : i32
    %210 = arith.addi %165, %c1_i32_71 : i32
    %211 = arith.index_cast %210 : i32 to index
    %212 = memref.load %arg3[%211] : memref<8xf32, #tpu.memory_space<smem>>
    %213 = vector.broadcast %212 : f32 to vector<1x8xf32>
    %214 = arith.addf %209, %213 : vector<1x8xf32>
    %c3_72 = arith.constant 3 : index
    %c1_73 = arith.constant 1 : index
    %c0_74 = arith.constant 0 : index
    %215 = vector.load %arg5[%c3_72, %c1_73, %c0_74] : memref<4x2x8xf32, #tpu.memory_space<vmem>>, vector<1x1x8xf32>
    %216 = vector.shape_cast %215 : vector<1x1x8xf32> to vector<1x8xf32>
    %217 = vector.shape_cast %214 : vector<1x8xf32> to vector<1x1x8xf32>
    tpu.vector_store %arg5[%c3_72, %c1_73, %c0_74], %217 {strides = array<i32>} : memref<4x2x8xf32, #tpu.memory_space<vmem>>, vector<1x1x8xf32>,
    return
  }
  func.func @transform_0(%arg0: i32, %arg1: i32) -> i32 {
    %c0_i32 = arith.constant 0 : i32
    %c0_i32_0 = arith.constant 0 : i32
    return %c0_i32 : i32
  }
  func.func @transform_1(%arg0: i32, %arg1: i32) -> i32 {
    %c0_i32 = arith.constant 0 : i32
    %c0_i32_0 = arith.constant 0 : i32
    return %c0_i32 : i32
  }
  func.func @transform_2(%arg0: i32, %arg1: i32) -> (i32, i32, i32) {
    %c0_i32 = arith.constant 0 : i32
    %c0_i32_0 = arith.constant 0 : i32
    return %arg0, %c0_i32, %arg1 : i32, i32, i32
  }
  func.func @transform_3(%arg0: i32, %arg1: i32) -> (i32, i32, i32) {
    %c0_i32 = arith.constant 0 : i32
    %c0_i32_0 = arith.constant 0 : i32
    return %arg0, %c0_i32, %arg1 : i32, i32, i32
  }
}

</mosaic_0001>

<llo_original>
// kernel: tpu_custom_call.1
$region0: #{tpu_custom_call.1}
  #allocation0 [shape = 'u32[]', space=smem, size = 0x4, offset = 0x4, fixed_abs, tag = 'smem constant byte address 0x4 - core index']
  #allocation1 [shape = 'u32[144,128]{1,0:T(1,128)}', space=vmem, size = 0x12000, scoped, tag = 'internal scratch']
  %s0 = inlined_call_operand.hbm [shape: f32[16], index: 0, kind: input, shape index: {}]
  %s1 = inlined_call_operand.vmem [shape: f32[8], index: 1, kind: input, shape index: {}]
  %s2 = inlined_call_operand.hbm [shape: f32[4,2,8], index: 2, kind: input, shape index: {}]
  %s3 = inlined_call_operand.hbm [shape: f32[4,2,8], index: 3, kind: output, shape index: {}]
  %s4 = sld [smem:[#allocation0]]
  $region34: #{tpu_custom_call.1} parent=0
    _
  %s6 = ssub.s32 1, %s4
  %s7 = scalar_select 0, %s6, %s4
  $region1: #{tpu_custom_call.1} parent=0
    #allocation2 [shape = 'u8[512]{0}', space=smem, size = 0x200, scoped, tag = 'input window, operand 0, single buffered']
    #allocation3 [shape = 's32[1]{0}', space=sflag, size = 0x4, scoped, tag = 'scoped memory for tpu_custom_call.1']
    #allocation4 [shape = 's32[1]{0}', space=sflag, size = 0x4, scoped, tag = 'scoped memory for tpu_custom_call.1']
    #allocation5 [shape = 's32[1]{0}', space=sflag, size = 0x4, scoped, tag = 'scoped memory for tpu_custom_call.1']
    #allocation6 [shape = 's32[1]{0}', space=sflag, size = 0x4, scoped, tag = 'scoped memory for tpu_custom_call.1']
    #allocation7 [shape = 'u8[512]{0}', space=smem, size = 0x200, scoped, tag = 'input window, operand 1, single buffered']
    #allocation8 [shape = 'u8[4096]{0}', space=vmem, size = 0x1000, scoped, tag = 'input window, operand 2, single buffered']
    #allocation9 [shape = 'u8[4096]{0}', space=vmem, size = 0x1000, scoped, tag = 'output window, operand 0, single buffered']
    %8 = vsyncpa [#allocation5], 0
    %9 = vsyncpa [#allocation6], 0
    %10 = vsyncpa [#allocation3], 0
    %11 = vsyncpa [#allocation4], 0
    // Predicated region
    $region2: #{tpu_custom_call.1} parent=1 // pred_check
      _
    $region3: #{tpu_custom_call.1} parent=1 // pred_check_branch
      %13 = sbr.rel (0) target = $region5
    $region4: #{tpu_custom_call.1} parent=1 // pred_region
      %s15 = ssub.s32 16, 16
      %16 = vsyncadd [#allocation5], %s15
      %19 = dma.hbm_to_smem %s0, 16, [#allocation2], [#allocation5]
    $region5: #{tpu_custom_call.1} parent=1 // pred_fallthru
      _
    // Predicated region
    $region6: #{tpu_custom_call.1} parent=1 // pred_check
      _
    $region7: #{tpu_custom_call.1} parent=1 // pred_check_branch
      %21 = sbr.rel (0) target = $region9
    $region8: #{tpu_custom_call.1} parent=1 // pred_region
      %s23 = ssub.s32 16, 16
      %24 = vsyncadd [#allocation6], %s23
      %s26 = sshll.u32 %s1, 4
      %s27 = int_to_ptr.vmem [resolvable:$true] %s26
      %29 = dma.vmem_to_smem %s27, 16, [#allocation7], [#allocation6]
    $region9: #{tpu_custom_call.1} parent=1 // pred_fallthru
      _
    // Predicated region
    $region10: #{tpu_custom_call.1} parent=1 // pred_check
      _
    $region11: #{tpu_custom_call.1} parent=1 // pred_check_branch
      %31 = sbr.rel (0) target = $region13
    $region12: #{tpu_custom_call.1} parent=1 // pred_region
      %s33 = ssub.s32 128, 128
      %34 = vsyncadd [#allocation3], %s33
      %s35 = sshll.u32 [#allocation8], 4
      %s36 = int_to_ptr.vmem [resolvable:$true] %s35
      %41 = dma.hbm_to_vmem [thread:$0]  %s2, 128, %s36, [#allocation3], 32, 32, 2
    $region13: #{tpu_custom_call.1} parent=1 // pred_fallthru
      _
    // Predicated region
    $region14: #{tpu_custom_call.1} parent=1 // pred_check
      _
    $region15: #{tpu_custom_call.1} parent=1 // pred_check_branch
      %43 = sbr.rel (0) target = $region17
    $region16: #{tpu_custom_call.1} parent=1 // pred_region
      %44 = dma.done [#allocation5], 16
    $region17: #{tpu_custom_call.1} parent=1 // pred_fallthru
      _
    // Predicated region
    $region18: #{tpu_custom_call.1} parent=1 // pred_check
      _
    $region19: #{tpu_custom_call.1} parent=1 // pred_check_branch
      %46 = sbr.rel (0) target = $region21
    $region20: #{tpu_custom_call.1} parent=1 // pred_region
      %47 = dma.done [#allocation6], 16
    $region21: #{tpu_custom_call.1} parent=1 // pred_fallthru
      _
    // Predicated region
    $region22: #{tpu_custom_call.1} parent=1 // pred_check
      _
    $region23: #{tpu_custom_call.1} parent=1 // pred_check_branch
      %49 = sbr.rel (0) target = $region25
    $region24: #{tpu_custom_call.1} parent=1 // pred_region
      %50 = dma.done [#allocation3], 128
    $region25: #{tpu_custom_call.1} parent=1 // pred_fallthru
      _
    %51 = sfence
    %s52 = smul.u32 0, 4
    %v53 = vld [vmem:[#allocation8] sm:$0x3]
    %v54 = vld [vmem:[#allocation8 + $0x2] sm:$0x3]
    %v55 = vld [vmem:[#allocation8 + $0x4] sm:$0x3]
    %v56 = vld [vmem:[#allocation8 + $0x6] sm:$0x3]
    %s57 = smul.u32 0, 8
    %s58 = smul.u32 0, 16
    %s59 = sld [smem:[#allocation2 + %s58]]
    %v60 = vstv %s59
    %v61 = vmul.f32 %v60, %v53
    %s62 = sadd.s32 %s58, 1
    %s63 = sld [smem:[#allocation2 + %s62]]
    %v64 = vstv %s63
    %v65 = vmul.f32 %v64, %v53
    %v67 = vrot.slane %v65, 1
    %v69 = vadd.f32 %v61, %v67
    %s70 = sld [smem:[#allocation7 + %s57]]
    %v71 = vstv %s70
    %v72 = vadd.f32 %v69, %v71
    %vm73 = vcmask 57344
    %74 = vst.msk [vmem:[#allocation9] sm:$0x1] %vm73, %v72
    %s75 = sadd.s32 %s57, 1
    %s76 = smul.u32 %s75, 2
    %s77 = sld [smem:[#allocation2 + %s76]]
    %v78 = vstv %s77
    %v79 = vmul.f32 %v78, %v53
    %s80 = sadd.s32 %s76, 1
    %s81 = sld [smem:[#allocation2 + %s80]]
    %v82 = vstv %s81
    %v83 = vmul.f32 %v82, %v53
    %v85 = vrot.slane %v83, 1
    %v87 = vadd.f32 %v79, %v85
    %s88 = sld [smem:[#allocation7 + %s75]]
    %v89 = vstv %s88
    %v90 = vadd.f32 %v87, %v89
    %91 = vst.msk [vmem:[#allocation9 + $0x1] sm:$0x1] %vm73, %v90
    %s92 = sadd.s32 %s52, 1
    %s93 = smul.u32 %s92, 2
    %s94 = smul.u32 %s92, 4
    %s95 = sld [smem:[#allocation2 + %s94]]
    %v96 = vstv %s95
    %v97 = vmul.f32 %v96, %v54
    %s98 = sadd.s32 %s94, 1
    %s99 = sld [smem:[#allocation2 + %s98]]
    %v100 = vstv %s99
    %v101 = vmul.f32 %v100, %v54
    %v103 = vrot.slane %v101, 1
    %v105 = vadd.f32 %v97, %v103
    %s106 = sld [smem:[#allocation7 + %s93]]
    %v107 = vstv %s106
    %v108 = vadd.f32 %v105, %v107
    %s109 = scalar_lea.vmem [#allocation9], 2
    %110 = vst.msk [vmem:[%s109] sm:$0x1] %vm73, %v108
    %s111 = sadd.s32 %s93, 1
    %s112 = smul.u32 %s111, 2
    %s113 = sld [smem:[#allocation2 + %s112]]
    %v114 = vstv %s113
    %v115 = vmul.f32 %v114, %v54
    %s116 = sadd.s32 %s112, 1
    %s117 = sld [smem:[#allocation2 + %s116]]
    %v118 = vstv %s117
    %v119 = vmul.f32 %v118, %v54
    %v121 = vrot.slane %v119, 1
    %v123 = vadd.f32 %v115, %v121
    %s124 = sld [smem:[#allocation7 + %s111]]
    %v125 = vstv %s124
    %v126 = vadd.f32 %v123, %v125
    %127 = vst.msk [vmem:[%s109 + $0x1] sm:$0x1] %vm73, %v126
    %s128 = sadd.s32 %s52, 2
    %s129 = smul.u32 %s128, 2
    %s130 = smul.u32 %s128, 4
    %s131 = sld [smem:[#allocation2 + %s130]]
    %v132 = vstv %s131
    %v133 = vmul.f32 %v132, %v55
    %s134 = sadd.s32 %s130, 1
    %s135 = sld [smem:[#allocation2 + %s134]]
    %v136 = vstv %s135
    %v137 = vmul.f32 %v136, %v55
    %v139 = vrot.slane %v137, 1
    %v141 = vadd.f32 %v133, %v139
    %s142 = sld [smem:[#allocation7 + %s129]]
    %v143 = vstv %s142
    %v144 = vadd.f32 %v141, %v143
    %s145 = scalar_lea.vmem [#allocation9], 4
    %146 = vst.msk [vmem:[%s145] sm:$0x1] %vm73, %v144
    %s147 = sadd.s32 %s129, 1
    %s148 = smul.u32 %s147, 2
    %s149 = sld [smem:[#allocation2 + %s148]]
    %v150 = vstv %s149
    %v151 = vmul.f32 %v150, %v55
    %s152 = sadd.s32 %s148, 1
    %s153 = sld [smem:[#allocation2 + %s152]]
    %v154 = vstv %s153
    %v155 = vmul.f32 %v154, %v55
    %v157 = vrot.slane %v155, 1
    %v159 = vadd.f32 %v151, %v157
    %s160 = sld [smem:[#allocation7 + %s147]]
    %v161 = vstv %s160
    %v162 = vadd.f32 %v159, %v161
    %163 = vst.msk [vmem:[%s145 + $0x1] sm:$0x1] %vm73, %v162
    %s164 = sadd.s32 %s52, 3
    %s165 = smul.u32 %s164, 2
    %s166 = smul.u32 %s164, 4
    %s167 = sld [smem:[#allocation2 + %s166]]
    %v168 = vstv %s167
    %v169 = vmul.f32 %v168, %v56
    %s170 = sadd.s32 %s166, 1
    %s171 = sld [smem:[#allocation2 + %s170]]
    %v172 = vstv %s171
    %v173 = vmul.f32 %v172, %v56
    %v175 = vrot.slane %v173, 1
    %v177 = vadd.f32 %v169, %v175
    %s178 = sld [smem:[#allocation7 + %s165]]
    %v179 = vstv %s178
    %v180 = vadd.f32 %v177, %v179
    %s181 = scalar_lea.vmem [#allocation9], 6
    %182 = vst.msk [vmem:[%s181] sm:$0x1] %vm73, %v180
    %s183 = sadd.s32 %s165, 1
    %s184 = smul.u32 %s183, 2
    %s185 = sld [smem:[#allocation2 + %s184]]
    %v186 = vstv %s185
    %v187 = vmul.f32 %v186, %v56
    %s188 = sadd.s32 %s184, 1
    %s189 = sld [smem:[#allocation2 + %s188]]
    %v190 = vstv %s189
    %v191 = vmul.f32 %v190, %v56
    %v193 = vrot.slane %v191, 1
    %v195 = vadd.f32 %v187, %v193
    %s196 = sld [smem:[#allocation7 + %s183]]
    %v197 = vstv %s196
    %v198 = vadd.f32 %v195, %v197
    %199 = vst.msk [vmem:[%s181 + $0x1] sm:$0x1] %vm73, %v198
    // Predicated region
    $region26: #{tpu_custom_call.1} parent=1 // pred_check
      _
    $region27: #{tpu_custom_call.1} parent=1 // pred_check_branch
      %201 = sbr.rel (0) target = $region29
    $region28: #{tpu_custom_call.1} parent=1 // pred_region
      %s203 = ssub.s32 128, 128
      %204 = vsyncadd [#allocation4], %s203
      %s205 = sshll.u32 [#allocation9], 4
      %s206 = int_to_ptr.vmem [resolvable:$true] %s205
      %211 = dma.vmem_to_hbm [thread:$0]  %s206, 128, %s3, [#allocation4], 32, 32, 2
    $region29: #{tpu_custom_call.1} parent=1 // pred_fallthru
      _
    // Predicated region
    $region30: #{tpu_custom_call.1} parent=1 // pred_check
      _
    $region31: #{tpu_custom_call.1} parent=1 // pred_check_branch
      %213 = sbr.rel (0) target = $region33
    $region32: #{tpu_custom_call.1} parent=1 // pred_region
      %214 = dma.done [#allocation4], 128
    $region33: #{tpu_custom_call.1} parent=1 // pred_fallthru
      _
    %215 = vsyncpa [#allocation3], 1
    %216 = vsyncpa [#allocation4], 1
    %217 = vsyncpa [#allocation5], 1
    %218 = vsyncpa [#allocation6], 1

</llo_original>
